<compile_context>
chip_gen: v5e
topology: v5e:2x2
jax: 0.10.0
libtpu: 0.0.40
codegen_flags: <defaults>
</compile_context>

<pallas_src>
import functools

import jax
import jax.numpy as jnp
from jax.experimental import pallas as pl
from jax.experimental.pallas import tpu as pltpu

LANES = 128  # vreg lane width; last dim of the 2D view


def _make_sine_kernel(w0: float):
    w0 = float(w0)

    def kernel(x_ref, o_ref):
        # Elementwise hot path on VPU/EUP. Upcast to f32 so sin range
        # reduction stays accurate for bf16/fp16; no-op casts for f32 inputs.
        xv = x_ref[...].astype(jnp.float32)
        o_ref[...] = jnp.sin(w0 * xv).astype(o_ref.dtype)

    return kernel


def _sublane_multiple(dtype) -> int:
    # dtype-dependent sublane packing: f32 -> 8, bf16/fp16 -> 16, int8/fp8 -> 32
    return {4: 8, 2: 16, 1: 32}.get(jnp.dtype(dtype).itemsize, 8)


def _pick_tile_rows(rows: int, sub: int, max_tile: int) -> int:
    """Row-tile choice.

    - Small arrays: one full-extent block (legal even if rows % sub != 0),
      avoiding extra per-grid-step overhead (~0.35 us each).
    - Arrays that fit in one max_tile block but are large: split ~in half so
      dimension_semantics=("parallel",) can shard across both v7x TensorCores.
    - Otherwise: largest sublane-aligned tile <= max_tile.
    """
    split_threshold = max(2 * 512, 2 * sub)  # only split when each half is sizable
    if rows <= max_tile and rows < split_threshold:
        return rows
    t = min(max_tile, rows)
    if t == rows:
        t = -(-rows // 2)
    return max(sub, (t // sub) * sub)


@functools.partial(jax.jit, static_argnames=("w0", "tile_rows"))
def sine(x: jax.Array, w0: float = 1.0, *, tile_rows: int = 4096) -> jax.Array:
    """Pallas TPU implementation of Sine.forward: sin(w0 * x)."""
    orig_shape = x.shape
    dtype = x.dtype

    flat = x.reshape(-1)
    n = flat.shape[0]
    n_main = (n // LANES) * LANES
    tail = n - n_main

    if n_main == 0:
        # Tiny input (< 128 elements): not worth a kernel launch.
        y = jnp.sin(jnp.float32(w0) * flat.astype(jnp.float32)).astype(dtype)
        return y.reshape(orig_shape)

    rows = n_main // LANES
    sub = _sublane_multiple(dtype)
    tr = _pick_tile_rows(rows, sub, tile_rows)
    grid = (pl.cdiv(rows, tr),)

    # No full-array padding: partial row blocks are masked by Pallas.
    x2d = (flat[:n_main] if tail else flat).reshape(rows, LANES)

    out2d = pl.pallas_call(
        _make_sine_kernel(w0),
        out_shape=jax.ShapeDtypeStruct((rows, LANES), dtype),
        grid=grid,
        in_specs=[pl.BlockSpec((tr, LANES), lambda i: (i, 0))],
        out_specs=pl.BlockSpec((tr, LANES), lambda i: (i, 0)),
        compiler_params=pltpu.CompilerParams(
            dimension_semantics=("parallel",),
        ),
    )(x2d)

    if tail:
        # Handle the sub-128-element lane tail outside the kernel (rare path).
        tail_out = jnp.sin(
            jnp.float32(w0) * flat[n_main:].astype(jnp.float32)
        ).astype(dtype)
        return jnp.concatenate([out2d.reshape(-1), tail_out]).reshape(orig_shape)
    return out2d.reshape(orig_shape)


if __name__ == "__main__":
    key = jax.random.PRNGKey(0)

    # NCHW-style input consistent with how Sine is used inside the SIREN net.
    x = jax.random.normal(key, (2, 4, 16, 16), dtype=jnp.float32)
    w0 = 30.0  # typical SIREN first-layer w0; module default is 1.0

    y = sine(x, w0=w0)
    y = jax.block_until_ready(y)
    y_ref = jnp.sin(w0 * x)
    assert y.shape == x.shape and y.dtype == x.dtype
    assert jnp.allclose(y, y_ref, atol=1e-5, rtol=1e-5)

    # Secondary check: shape that exercises the small / lane-tail path.
    x2 = jax.random.normal(jax.random.PRNGKey(1), (2, 3, 43), dtype=jnp.float32)
    y2 = jax.block_until_ready(sine(x2, w0=1.0))
    assert y2.shape == x2.shape and y2.dtype == x2.dtype
    assert jnp.allclose(y2, jnp.sin(x2), atol=1e-5, rtol=1e-5)

    # Third check: bf16 input (upcast-inside-kernel path, sublane multiple 16).
    x3 = jax.random.normal(jax.random.PRNGKey(2), (4, 8, 32), dtype=jnp.bfloat16)
    y3 = jax.block_until_ready(sine(x3, w0=w0))
    y3_ref = jnp.sin(jnp.float32(w0) * x3.astype(jnp.float32)).astype(jnp.bfloat16)
    assert y3.shape == x3.shape and y3.dtype == x3.dtype
    assert jnp.allclose(
        y3.astype(jnp.float32), y3_ref.astype(jnp.float32), atol=2e-2, rtol=2e-2
    )

    print("KERNEL_OK")
</pallas_src>

<mosaic_0001>
module attributes {stable_mosaic.version = 11 : i64} {
  func.func @kernel(%arg0: i32, %arg1: memref<16x128xf32, #tpu.memory_space<vmem>>, %arg2: memref<16x128xf32, #tpu.memory_space<vmem>>) attributes {dimension_semantics = [#tpu.dimension_semantics<parallel>], iteration_bounds = array<i64: 1>, scalar_prefetch = 0 : i64, scratch_operands = 0 : i64, tpu.core_type = #tpu.core_type<tc>, window_params = [{transform_indices = @transform_0, window_bounds = array<i64: 16, 128>}, {transform_indices = @transform_1, window_bounds = array<i64: 16, 128>}]} {
    %c0 = arith.constant 0 : index
    %c0_0 = arith.constant 0 : index
    %0 = vector.load %arg1[%c0, %c0_0] : memref<16x128xf32, #tpu.memory_space<vmem>>, vector<16x128xf32>
    %cst = arith.constant 3.000000e+01 : f32
    %1 = vector.broadcast %cst : f32 to vector<16x128xf32>
    %2 = arith.mulf %1, %0 : vector<16x128xf32>
    %3 = math.sin %2 : vector<16x128xf32>
    %c0_1 = arith.constant 0 : index
    %c0_2 = arith.constant 0 : index
    %4 = vector.load %arg2[%c0_1, %c0_2] : memref<16x128xf32, #tpu.memory_space<vmem>>, vector<16x128xf32>
    tpu.vector_store %arg2[%c0_1, %c0_2], %3 {strides = array<i32>} : memref<16x128xf32, #tpu.memory_space<vmem>>, vector<16x128xf32>,
    return
  }
  func.func @transform_0(%arg0: i32) -> (i32, i32) {
    %c0_i32 = arith.constant 0 : i32
    %c0_i32_0 = arith.constant 0 : i32
    return %arg0, %c0_i32 : i32, i32
  }
  func.func @transform_1(%arg0: i32) -> (i32, i32) {
    %c0_i32 = arith.constant 0 : i32
    %c0_i32_0 = arith.constant 0 : i32
    return %arg0, %c0_i32 : i32, i32
  }
}

</mosaic_0001>

<llo_original>
// kernel: sine.1
$region0: #{sine.1}
  #allocation0 [shape = 'u32[]', space=smem, size = 0x4, offset = 0x4, fixed_abs, tag = 'smem constant byte address 0x4 - core index']
  #allocation1 [shape = 'u32[72,128]{1,0:T(1,128)}', space=vmem, size = 0x9000, scoped, tag = 'internal scratch']
  %s0 = inlined_call_operand.vmem [shape: f32[16,128], index: 0, kind: input, shape index: {}]
  %s1 = inlined_call_operand.vmem [shape: f32[16,128], index: 1, kind: output, shape index: {}]
  %s2 = sld [smem:[#allocation0]]
  $region14: #{sine.1} parent=0
    _
  %s4 = ssub.s32 1, %s2
  %s5 = scalar_select 0, %s4, %s2
  // Predicated region
  $region2: #{sine.1} parent=0 // pred_check
    _
  $region3: #{sine.1} parent=0 // pred_check_branch
    %7 = sbr.rel (0) target = $region5
  $region4: #{sine.1} parent=0 // pred_region
    _
  $region5: #{sine.1} parent=0 // pred_fallthru
    _
  %v8 = vld [vmem:[%s0] sm:$0xff]
  %v9 = vld [vmem:[%s0 + $0x8] sm:$0xff]
  %v10 = vmul.f32 %v8, 30.0
  %v11 = vmul.f32 %v9, 30.0
  %v12 = vand.u32 2147483647, %v10
  %vm13 = vcmp.le.f32.partialorder %v12, 0.7853982
  %vm14 = vcmp.lt.s32.totalorder %v10, 0
  %v15 = vand.u32 %v10, 2139095040
  %v16 = vshrl.u32 %v15, 23
  %v17 = vsub.s32 %v16, 127
  %v18 = vand.u32 2147483647, %v10
  %v19 = vand.u32 %v18, 8388607
  %v20 = vor.u32 %v19, 8388608
  %v21 = vsub.s32 0, %v20
  %v22 = vadd.s32 %v17, 1
  %vm23 = vcmp.gt.s32.totalorder %v22, 0
  %v24 = vsel %vm23, %v22, 0
  %v25 = vshrl.u32 %v24, 5
  %v26 = vand.u32 %v24, 31
  %v27 = vsub.s32 32, %v26
  %v28 = vshrl.u32 683565275, %v27
  %v29 = vshll.u32 683565275, %v26
  %v30 = vshrl.u32 2475754826, %v27
  %v31 = vor.u32 %v29, %v30
  %v32 = vshll.u32 2475754826, %v26
  %v33 = vshrl.u32 2131351028, %v27
  %v34 = vor.u32 %v32, %v33
  %v35 = vshll.u32 2131351028, %v26
  %v36 = vshrl.u32 2102212464, %v27
  %v37 = vor.u32 %v35, %v36
  %v38 = vshll.u32 2102212464, %v26
  %v39 = vshrl.u32 920167782, %v27
  %v40 = vor.u32 %v38, %v39
  %v41 = vshll.u32 920167782, %v26
  %v42 = vshrl.u32 1326507024, %v27
  %v43 = vor.u32 %v41, %v42
  %vm44 = vcmp.lt.s32.totalorder %v25, 1
  %vm45 = vcmp.lt.s32.totalorder %v25, 2
  %vm46 = vcmp.lt.s32.totalorder %v25, 3
  %vm47 = vcmp.lt.s32.totalorder %v25, 4
  %v48 = vsel %vm44, %v28, %v31
  %v49 = vsel %vm47, %v37, 2102212464
  %v50 = vsel %vm46, %v34, %v49
  %v51 = vsel %vm45, %v48, %v50
  %v52 = vsel %vm44, %v31, %v34
  %v53 = vsel %vm47, %v40, 920167782
  %v54 = vsel %vm46, %v37, %v53
  %v55 = vsel %vm45, %v52, %v54
  %v56 = vsel %vm44, %v34, %v37
  %v57 = vsel %vm47, %v43, 1326507024
  %v58 = vsel %vm46, %v40, %v57
  %v59 = vsel %vm45, %v56, %v58
  %v60 = vshll.u32 %v20, 8
  %v61 = vand.u32 %v60, 65535
  %v62 = vshrl.u32 %v60, 16
  %v63 = vand.u32 %v59, 65535
  %v64 = vshrl.u32 %v59, 16
  %v65 = vmul.u32 %v61, %v63
  %v66 = vmul.u32 %v61, %v64
  %v67 = vmul.u32 %v62, %v63
  %v68 = vmul.u32 %v62, %v64
  %v69 = vshll.u32 %v66, 16
  %v70 = vshrl.u32 %v66, 16
  %v71 = vshll.u32 %v67, 16
  %v72 = vshrl.u32 %v67, 16
  %vm73 = vc.u32 %v65, %v69
  %v74 = vsel %vm73, 1, 0
  %v75 = vadd.s32 %v65, %v69
  %v76 = vadd.s32 %v68, %v74
  %vm77 = vc.u32 %v75, %v71
  %v78 = vsel %vm77, 1, 0
  %v79 = vadd.s32 %v75, %v71
  %v80 = vadd.s32 %v76, %v78
  %v81 = vadd.s32 %v80, %v70
  %v82 = vadd.s32 %v81, %v72
  %v83 = vand.u32 %v60, 65535
  %v84 = vshrl.u32 %v60, 16
  %v85 = vand.u32 %v55, 65535
  %v86 = vshrl.u32 %v55, 16
  %v87 = vmul.u32 %v83, %v85
  %v88 = vmul.u32 %v83, %v86
  %v89 = vmul.u32 %v84, %v85
  %v90 = vmul.u32 %v84, %v86
  %v91 = vshll.u32 %v88, 16
  %v92 = vshrl.u32 %v88, 16
  %v93 = vshll.u32 %v89, 16
  %v94 = vshrl.u32 %v89, 16
  %vm95 = vc.u32 %v87, %v91
  %v96 = vsel %vm95, 1, 0
  %v97 = vadd.s32 %v87, %v91
  %v98 = vadd.s32 %v90, %v96
  %vm99 = vc.u32 %v97, %v93
  %v100 = vsel %vm99, 1, 0
  %v101 = vadd.s32 %v97, %v93
  %v102 = vadd.s32 %v98, %v100
  %v103 = vadd.s32 %v102, %v92
  %v104 = vadd.s32 %v103, %v94
  %v105 = vmul.u32 %v60, %v51
  %v106 = vadd.s32 %v82, %v101
  %vm107 = vc.u32 %v82, %v101
  %v108 = vadd.s32 %v104, 1
  %v109 = vsel %vm107, %v108, %v104
  %v110 = vadd.s32 %v105, %v109
  %v111 = vadd.s32 %v110, 536870912
  %v112 = vshrl.u32 %v111, 30
  %v113 = vshll.u32 %v112, 30
  %v114 = vsub.s32 %v110, %v113
  %vm115 = vcmp.lt.s32.totalorder %v114, 0
  %v116 = vsub.s32 0, %v114
  %v117 = vsel %vm115, %v116, %v114
  %v118 = vclz %v117
  %v119 = vsub.s32 %v118, 2
  %vm120 = vcmp.gt.s32.totalorder 0, %v119
  %v121 = vsel %vm120, 0, %v119
  %v122 = vsub.s32 32, %v121
  %v123 = vshll.u32 %v114, %v121
  %v124 = vshrl.u32 %v106, %v122
  %v125 = vor.u32 %v123, %v124
  %v126 = vsub.s32 4294967266, %v121
  %v127 = vadd.s32 %v126, 127
  %v128 = vshll.u32 %v127, 23
  %v129 = vor.u32 4788187, %v128
  %v130 = vand.u32 2147483647, %v129
  %v132 = vcvt.s32.f32 %v125
  %v133 = vmul.f32 %v132, %v130
  %v134 = vxor.u32 %v133, 2147483648
  %v135 = vsel %vm14, %v134, %v133
  %v136 = vsub.s32 4, %v112
  %v137 = vsel %vm14, %v136, %v112
  %v138 = vsel %vm13, %v10, %v135
  %v139 = vsel %vm13, 0, %v137
  %v140 = vmul.f32 %v138, %v138
  %v141 = vmul.f32 %v140, -0.001358992
  %v142 = vadd.f32 %v141, 0.041655596
  %v143 = vmul.f32 %v140, %v142
  %v144 = vadd.f32 %v143, -0.4999988
  %v145 = vmul.f32 %v140, %v144
  %v146 = vadd.f32 1.0, %v145
  %v147 = vmul.f32 %v138, %v138
  %v148 = vmul.f32 %v147, -0.00019511016
  %v149 = vadd.f32 %v148, 0.008332121
  %v150 = vmul.f32 %v147, %v149
  %v151 = vadd.f32 %v150, -0.16666654
  %v152 = vmul.f32 %v147, %v151
  %v153 = vadd.f32 %v152, 1.0
  %v154 = vmul.f32 %v153, %v138
  %vm155 = vweird.f32 %v10
  %v156 = vadd.s32 %v139, 3
  %v157 = vand.u32 %v156, 3
  %vm158 = vcmp.lt.s32.totalorder %v157, 2
  %vm159 = vcmp.eq.s32.totalorder %v157, 0
  %v160 = vxor.u32 %v154, 2147483648
  %v161 = vsel %vm159, %v146, %v160
  %vm162 = vcmp.eq.s32.totalorder %v157, 2
  %v163 = vxor.u32 %v146, 2147483648
  %v164 = vsel %vm162, %v163, %v154
  %v165 = vsel %vm158, %v161, %v164
  %v166 = vsel %vm155, nan, %v165
  %v167 = vand.u32 2147483647, %v11
  %vm168 = vcmp.le.f32.partialorder %v167, 0.7853982
  %vm169 = vcmp.lt.s32.totalorder %v11, 0
  %v170 = vand.u32 %v11, 2139095040
  %v171 = vshrl.u32 %v170, 23
  %v172 = vsub.s32 %v171, 127
  %v173 = vand.u32 2147483647, %v11
  %v174 = vand.u32 %v173, 8388607
  %v175 = vor.u32 %v174, 8388608
  %v176 = vsub.s32 0, %v175
  %v177 = vadd.s32 %v172, 1
  %vm178 = vcmp.gt.s32.totalorder %v177, 0
  %v179 = vsel %vm178, %v177, 0
  %v180 = vshrl.u32 %v179, 5
  %v181 = vand.u32 %v179, 31
  %v182 = vsub.s32 32, %v181
  %v183 = vshrl.u32 683565275, %v182
  %v184 = vshll.u32 683565275, %v181
  %v185 = vshrl.u32 2475754826, %v182
  %v186 = vor.u32 %v184, %v185
  %v187 = vshll.u32 2475754826, %v181
  %v188 = vshrl.u32 2131351028, %v182
  %v189 = vor.u32 %v187, %v188
  %v190 = vshll.u32 2131351028, %v181
  %v191 = vshrl.u32 2102212464, %v182
  %v192 = vor.u32 %v190, %v191
  %v193 = vshll.u32 2102212464, %v181
  %v194 = vshrl.u32 920167782, %v182
  %v195 = vor.u32 %v193, %v194
  %v196 = vshll.u32 920167782, %v181
  %v197 = vshrl.u32 1326507024, %v182
  %v198 = vor.u32 %v196, %v197
  %vm199 = vcmp.lt.s32.totalorder %v180, 1
  %vm200 = vcmp.lt.s32.totalorder %v180, 2
  %vm201 = vcmp.lt.s32.totalorder %v180, 3
  %vm202 = vcmp.lt.s32.totalorder %v180, 4
  %v203 = vsel %vm199, %v183, %v186
  %v204 = vsel %vm202, %v192, 2102212464
  %v205 = vsel %vm201, %v189, %v204
  %v206 = vsel %vm200, %v203, %v205
  %v207 = vsel %vm199, %v186, %v189
  %v208 = vsel %vm202, %v195, 920167782
  %v209 = vsel %vm201, %v192, %v208
  %v210 = vsel %vm200, %v207, %v209
  %v211 = vsel %vm199, %v189, %v192
  %v212 = vsel %vm202, %v198, 1326507024
  %v213 = vsel %vm201, %v195, %v212
  %v214 = vsel %vm200, %v211, %v213
  %v215 = vshll.u32 %v175, 8
  %v216 = vand.u32 %v215, 65535
  %v217 = vshrl.u32 %v215, 16
  %v218 = vand.u32 %v214, 65535
  %v219 = vshrl.u32 %v214, 16
  %v220 = vmul.u32 %v216, %v218
  %v221 = vmul.u32 %v216, %v219
  %v222 = vmul.u32 %v217, %v218
  %v223 = vmul.u32 %v217, %v219
  %v224 = vshll.u32 %v221, 16
  %v225 = vshrl.u32 %v221, 16
  %v226 = vshll.u32 %v222, 16
  %v227 = vshrl.u32 %v222, 16
  %vm228 = vc.u32 %v220, %v224
  %v229 = vsel %vm228, 1, 0
  %v230 = vadd.s32 %v220, %v224
  %v231 = vadd.s32 %v223, %v229
  %vm232 = vc.u32 %v230, %v226
  %v233 = vsel %vm232, 1, 0
  %v234 = vadd.s32 %v230, %v226
  %v235 = vadd.s32 %v231, %v233
  %v236 = vadd.s32 %v235, %v225
  %v237 = vadd.s32 %v236, %v227
  %v238 = vand.u32 %v215, 65535
  %v239 = vshrl.u32 %v215, 16
  %v240 = vand.u32 %v210, 65535
  %v241 = vshrl.u32 %v210, 16
  %v242 = vmul.u32 %v238, %v240
  %v243 = vmul.u32 %v238, %v241
  %v244 = vmul.u32 %v239, %v240
  %v245 = vmul.u32 %v239, %v241
  %v246 = vshll.u32 %v243, 16
  %v247 = vshrl.u32 %v243, 16
  %v248 = vshll.u32 %v244, 16
  %v249 = vshrl.u32 %v244, 16
  %vm250 = vc.u32 %v242, %v246
  %v251 = vsel %vm250, 1, 0
  %v252 = vadd.s32 %v242, %v246
  %v253 = vadd.s32 %v245, %v251
  %vm254 = vc.u32 %v252, %v248
  %v255 = vsel %vm254, 1, 0
  %v256 = vadd.s32 %v252, %v248
  %v257 = vadd.s32 %v253, %v255
  %v258 = vadd.s32 %v257, %v247
  %v259 = vadd.s32 %v258, %v249
  %v260 = vmul.u32 %v215, %v206
  %v261 = vadd.s32 %v237, %v256
  %vm262 = vc.u32 %v237, %v256
  %v263 = vadd.s32 %v259, 1
  %v264 = vsel %vm262, %v263, %v259
  %v265 = vadd.s32 %v260, %v264
  %v266 = vadd.s32 %v265, 536870912
  %v267 = vshrl.u32 %v266, 30
  %v268 = vshll.u32 %v267, 30
  %v269 = vsub.s32 %v265, %v268
  %vm270 = vcmp.lt.s32.totalorder %v269, 0
  %v271 = vsub.s32 0, %v269
  %v272 = vsel %vm270, %v271, %v269
  %v273 = vclz %v272
  %v274 = vsub.s32 %v273, 2
  %vm275 = vcmp.gt.s32.totalorder 0, %v274
  %v276 = vsel %vm275, 0, %v274
  %v277 = vsub.s32 32, %v276
  %v278 = vshll.u32 %v269, %v276
  %v279 = vshrl.u32 %v261, %v277
  %v280 = vor.u32 %v278, %v279
  %v281 = vsub.s32 4294967266, %v276
  %v282 = vadd.s32 %v281, 127
  %v283 = vshll.u32 %v282, 23
  %v284 = vor.u32 4788187, %v283
  %v285 = vand.u32 2147483647, %v284
  %v287 = vcvt.s32.f32 %v280
  %v288 = vmul.f32 %v287, %v285
  %v289 = vxor.u32 %v288, 2147483648
  %v290 = vsel %vm169, %v289, %v288
  %v291 = vsub.s32 4, %v267
  %v292 = vsel %vm169, %v291, %v267
  %v293 = vsel %vm168, %v11, %v290
  %v294 = vsel %vm168, 0, %v292
  %v295 = vmul.f32 %v293, %v293
  %v296 = vmul.f32 %v295, -0.001358992
  %v297 = vadd.f32 %v296, 0.041655596
  %v298 = vmul.f32 %v295, %v297
  %v299 = vadd.f32 %v298, -0.4999988
  %v300 = vmul.f32 %v295, %v299
  %v301 = vadd.f32 1.0, %v300
  %v302 = vmul.f32 %v293, %v293
  %v303 = vmul.f32 %v302, -0.00019511016
  %v304 = vadd.f32 %v303, 0.008332121
  %v305 = vmul.f32 %v302, %v304
  %v306 = vadd.f32 %v305, -0.16666654
  %v307 = vmul.f32 %v302, %v306
  %v308 = vadd.f32 %v307, 1.0
  %v309 = vmul.f32 %v308, %v293
  %vm310 = vweird.f32 %v11
  %v311 = vadd.s32 %v294, 3
  %v312 = vand.u32 %v311, 3
  %vm313 = vcmp.lt.s32.totalorder %v312, 2
  %vm314 = vcmp.eq.s32.totalorder %v312, 0
  %v315 = vxor.u32 %v309, 2147483648
  %v316 = vsel %vm314, %v301, %v315
  %vm317 = vcmp.eq.s32.totalorder %v312, 2
  %v318 = vxor.u32 %v301, 2147483648
  %v319 = vsel %vm317, %v318, %v309
  %v320 = vsel %vm313, %v316, %v319
  %v321 = vsel %vm310, nan, %v320
  %322 = vst [vmem:[%s1] sm:$0xff] %v166
  %323 = vst [vmem:[%s1 + $0x8] sm:$0xff] %v321
  // Predicated region
  $region6: #{sine.1} parent=0 // pred_check
    _
  $region7: #{sine.1} parent=0 // pred_check_branch
    %325 = sbr.rel (0) target = $region9
  $region8: #{sine.1} parent=0 // pred_region
    _
  $region9: #{sine.1} parent=0 // pred_fallthru
    _
  // Predicated region
  $region10: #{sine.1} parent=0 // pred_check
    _
  $region11: #{sine.1} parent=0 // pred_check_branch
    %327 = sbr.rel (0) target = $region13
  $region12: #{sine.1} parent=0 // pred_region
    _
  $region13: #{sine.1} parent=0 // pred_fallthru
    _

</llo_original>
